<compile_context>
chip_gen: v5e
topology: v5e:2x2
jax: 0.10.0
libtpu: 0.0.40
codegen_flags: <defaults>
</compile_context>

<pallas_src>
import jax
import jax.numpy as jnp
import numpy as np
from jax.experimental import pallas as pl
from jax.experimental.pallas import tpu as pltpu

EPS = 1e-5

_CPARAMS = pltpu.CompilerParams(
    dimension_semantics=("parallel",),      # batch tiles are independent -> megacore on v7x
    vmem_limit_bytes=32 * 1024 * 1024,      # explicit; fits v5e/v6e (128 MiB) and v7x (64 MiB)
)


def _conv1_shortcut_kernel(x_ref, wf_ref, y1_ref, st_ref, xpad_ref):
    """conv1 (k=3, p=1) and the 1x1 shortcut fused into one matmul, + BN partial stats.

    x_ref   : (Cin, L)        one batch element, native NCL layout
    wf_ref  : (2*Cout, 3*Cin) rows [0:Cout] = conv1 taps, rows [Cout:] = shortcut (center tap)
    y1_ref  : (2*Cout, L)     raw (pre-BN) conv1 / shortcut outputs
    st_ref  : (2*Cout, 2)     per-channel [sum, sum_of_squares] over this batch element
    xpad_ref: (Cin, L+2)      VMEM scratch holding the halo-padded input
    """
    cin, L = x_ref.shape
    # Halo padding via scratch (no wrapper jnp.pad, no concatenate-repad buffer).
    xpad_ref[:, 0:1] = jnp.zeros((cin, 1), xpad_ref.dtype)
    xpad_ref[:, L + 1:L + 2] = jnp.zeros((cin, 1), xpad_ref.dtype)
    xpad_ref[:, 1:L + 1] = x_ref[...]
    # im2col slab (3*Cin, L): row k*Cin + ci  ==  xpad[ci, l + k]
    xcol = jnp.concatenate(
        [xpad_ref[:, 0:L], xpad_ref[:, 1:L + 1], xpad_ref[:, 2:L + 2]], axis=0)
    y1 = jnp.dot(wf_ref[...], xcol, preferred_element_type=jnp.float32)
    y1_ref[...] = y1
    st_ref[:, 0:1] = jnp.sum(y1, axis=1, keepdims=True)
    st_ref[:, 1:2] = jnp.sum(y1 * y1, axis=1, keepdims=True)


def _bn1_relu_conv2_kernel(y1_ref, sb1_ref, w2_ref, y2_ref, st_ref, hpad_ref):
    """Folded BN1 (FMA) + ReLU + conv2 (k=3, p=1) as one matmul, + BN2 partial stats."""
    cout, L = y1_ref.shape
    scale = sb1_ref[:, 0:1]
    shift = sb1_ref[:, 1:2]
    h = jnp.maximum(y1_ref[...] * scale + shift, 0.0)
    hpad_ref[:, 0:1] = jnp.zeros((cout, 1), hpad_ref.dtype)
    hpad_ref[:, L + 1:L + 2] = jnp.zeros((cout, 1), hpad_ref.dtype)
    hpad_ref[:, 1:L + 1] = h.astype(hpad_ref.dtype)
    hcol = jnp.concatenate(
        [hpad_ref[:, 0:L], hpad_ref[:, 1:L + 1], hpad_ref[:, 2:L + 2]], axis=0)
    y2 = jnp.dot(w2_ref[...], hcol, preferred_element_type=jnp.float32)
    y2_ref[...] = y2
    st_ref[:, 0:1] = jnp.sum(y2, axis=1, keepdims=True)
    st_ref[:, 1:2] = jnp.sum(y2 * y2, axis=1, keepdims=True)


def _bn2_add_relu_kernel(y2_ref, ys_ref, sb2_ref, sbs_ref, o_ref):
    """Folded BN2 + folded shortcut BN + residual add + final ReLU (pure FMA epilogue)."""
    out2 = y2_ref[...] * sb2_ref[:, 0:1] + sb2_ref[:, 1:2]
    res = ys_ref[...] * sbs_ref[:, 0:1] + sbs_ref[:, 1:2]
    o_ref[...] = jnp.maximum(out2 + res, 0.0)


def _fold_bn(chan_sum, chan_sumsq, n, gamma, beta):
    """Training-mode BN (biased variance) folded into per-channel (scale, shift)."""
    mean = chan_sum / n
    var = jnp.maximum(chan_sumsq / n - mean * mean, 0.0)
    scale = gamma * jax.lax.rsqrt(var + EPS)
    shift = beta - mean * scale
    return jnp.stack([scale, shift], axis=1).astype(jnp.float32)   # (C, 2)


def residual_block(x_ncl, params, mxu_dtype=jnp.float32):
    """ResidualBlock forward.  x_ncl: (B, Cin, L) -> (B, Cout, L), both native NCL.

    mxu_dtype: dtype fed to the MXU matmuls (conv activations + weights).  On
    v6e/v7x use jnp.bfloat16 to halve DMA traffic and double MXU throughput;
    accumulation and all BN/ReLU math stay in f32 either way.
    """
    # TODO(synk): stride > 1, a custom `downsample` module, and the identity
    #             shortcut (in_channels == out_channels) are not implemented;
    #             the module defaults (stride=1, downsample=None, conv+BN
    #             shortcut) are assumed.  Very long L would additionally need
    #             tiling along L with halo exchange.
    w1, w2, ws, g1, b1, g2, b2, gs, bs = params
    B, Cin, L = x_ncl.shape
    Cout = w1.shape[0]
    n = float(B * L)

    # Fuse conv1's 3 taps + the 1x1 shortcut into one (2*Cout, 3*Cin) weight,
    # and conv2's 3 taps into (Cout, 3*Cout):  W[co, k*C + c] = w[co, c, k].
    w1f = jnp.transpose(w1, (0, 2, 1)).reshape(Cout, 3 * Cin)
    wsf = jnp.zeros((Cout, 3 * Cin), w1.dtype).at[:, Cin:2 * Cin].set(ws[:, :, 0])
    wf = jnp.concatenate([w1f, wsf], axis=0).astype(mxu_dtype)
    w2f = jnp.transpose(w2, (0, 2, 1)).reshape(Cout, 3 * Cout).astype(mxu_dtype)

    # ---- pass A: conv1 + shortcut (single matmul) + BN partial stats ----
    y1, st1 = pl.pallas_call(
        _conv1_shortcut_kernel,
        grid=(B,),
        in_specs=[
            pl.BlockSpec((None, Cin, L), lambda b: (b, 0, 0)),
            pl.BlockSpec((2 * Cout, 3 * Cin), lambda b: (0, 0)),
        ],
        out_specs=[
            pl.BlockSpec((None, 2 * Cout, L), lambda b: (b, 0, 0)),
            pl.BlockSpec((None, 2 * Cout, 2), lambda b: (b, 0, 0)),
        ],
        out_shape=[
            jax.ShapeDtypeStruct((B, 2 * Cout, L), jnp.float32),
            jax.ShapeDtypeStruct((B, 2 * Cout, 2), jnp.float32),
        ],
        scratch_shapes=[pltpu.VMEM((Cin, L + 2), mxu_dtype)],
        compiler_params=_CPARAMS,
    )(x_ncl.astype(mxu_dtype), wf)

    # tiny XLA glue: global BN stats + affine fold into (scale, shift) pairs
    tot1 = jnp.sum(st1, axis=0)                              # (2*Cout, 2)
    sb1 = _fold_bn(tot1[:Cout, 0], tot1[:Cout, 1], n, g1, b1)
    sbs = _fold_bn(tot1[Cout:, 0], tot1[Cout:, 1], n, gs, bs)

    # ---- pass B: BN1 + ReLU + conv2 (single matmul) + BN2 partial stats ----
    y2, st2 = pl.pallas_call(
        _bn1_relu_conv2_kernel,
        grid=(B,),
        in_specs=[
            pl.BlockSpec((None, Cout, L), lambda b: (b, 0, 0)),   # conv1 half of y1
            pl.BlockSpec((Cout, 2), lambda b: (0, 0)),
            pl.BlockSpec((Cout, 3 * Cout), lambda b: (0, 0)),
        ],
        out_specs=[
            pl.BlockSpec((None, Cout, L), lambda b: (b, 0, 0)),
            pl.BlockSpec((None, Cout, 2), lambda b: (b, 0, 0)),
        ],
        out_shape=[
            jax.ShapeDtypeStruct((B, Cout, L), jnp.float32),
            jax.ShapeDtypeStruct((B, Cout, 2), jnp.float32),
        ],
        scratch_shapes=[pltpu.VMEM((Cout, L + 2), mxu_dtype)],
        compiler_params=_CPARAMS,
    )(y1, sb1, w2f)

    tot2 = jnp.sum(st2, axis=0)                              # (Cout, 2)
    sb2 = _fold_bn(tot2[:, 0], tot2[:, 1], n, g2, b2)

    # ---- pass C: BN2 + shortcut BN + residual add + ReLU ----
    out = pl.pallas_call(
        _bn2_add_relu_kernel,
        grid=(B,),
        in_specs=[
            pl.BlockSpec((None, Cout, L), lambda b: (b, 0, 0)),   # raw conv2
            pl.BlockSpec((None, Cout, L), lambda b: (b, 1, 0)),   # shortcut half of y1
            pl.BlockSpec((Cout, 2), lambda b: (0, 0)),
            pl.BlockSpec((Cout, 2), lambda b: (0, 0)),
        ],
        out_specs=pl.BlockSpec((None, Cout, L), lambda b: (b, 0, 0)),
        out_shape=jax.ShapeDtypeStruct((B, Cout, L), jnp.float32),
        compiler_params=_CPARAMS,
    )(y2, y1, sb2, sbs)

    return out                                               # (B, Cout, L) native NCL


def ref_forward(x, params):
    """Pure-JAX reference of the PyTorch forward (train-mode BN)."""
    w1, w2, ws, g1, b1, g2, b2, gs, bs = params

    def conv1d(y, w, pad):
        return jax.lax.conv_general_dilated(
            y, w, window_strides=(1,), padding=[(pad, pad)],
            dimension_numbers=("NCH", "OIH", "NCH"))

    def bn(y, g, b):
        mean = jnp.mean(y, axis=(0, 2), keepdims=True)
        var = jnp.mean((y - mean) ** 2, axis=(0, 2), keepdims=True)
        return (y - mean) * jax.lax.rsqrt(var + EPS) * g[None, :, None] + b[None, :, None]

    out = jnp.maximum(bn(conv1d(x, w1, 1), g1, b1), 0.0)
    out = bn(conv1d(out, w2, 1), g2, b2)
    res = bn(conv1d(x, ws, 0), gs, bs)
    return jnp.maximum(out + res, 0.0)


if __name__ == "__main__":
    key = jax.random.PRNGKey(0)
    B, Cin, Cout, L = 2, 4, 8, 16
    ks = jax.random.split(key, 10)

    # deterministic synthetic parameters (shapes follow the module's __init__)
    w1 = 0.3 * jax.random.normal(ks[0], (Cout, Cin, 3), jnp.float32)   # conv1.weight
    w2 = 0.3 * jax.random.normal(ks[1], (Cout, Cout, 3), jnp.float32)  # conv2.weight
    ws = 0.3 * jax.random.normal(ks[2], (Cout, Cin, 1), jnp.float32)   # shortcut conv weight
    g1 = 1.0 + 0.1 * jax.random.normal(ks[3], (Cout,), jnp.float32)    # bn1.weight
    b1 = 0.1 * jax.random.normal(ks[4], (Cout,), jnp.float32)          # bn1.bias
    g2 = 1.0 + 0.1 * jax.random.normal(ks[5], (Cout,), jnp.float32)    # bn2.weight
    b2 = 0.1 * jax.random.normal(ks[6], (Cout,), jnp.float32)          # bn2.bias
    gs = 1.0 + 0.1 * jax.random.normal(ks[7], (Cout,), jnp.float32)    # shortcut bn weight
    bs = 0.1 * jax.random.normal(ks[8], (Cout,), jnp.float32)          # shortcut bn bias
    x = jax.random.normal(ks[9], (B, Cin, L), jnp.float32)             # NCL input

    params = (w1, w2, ws, g1, b1, g2, b2, gs, bs)

    out = residual_block(x, params)            # f32 MXU path (use bfloat16 on v6e/v7x)
    out = jax.block_until_ready(out)

    ref = ref_forward(x, params)
    np.testing.assert_allclose(np.asarray(out), np.asarray(ref), rtol=1e-4, atol=1e-4)
    print("KERNEL_OK")
</pallas_src>

<mosaic_0001>
module attributes {stable_mosaic.version = 11 : i64} {
  func.func @_conv1_shortcut_kernel(%arg0: i32, %arg1: memref<1x4x16xf32, #tpu.memory_space<vmem>>, %arg2: memref<16x12xf32, #tpu.memory_space<vmem>>, %arg3: memref<1x16x16xf32, #tpu.memory_space<vmem>>, %arg4: memref<1x16x2xf32, #tpu.memory_space<vmem>>, %arg5: memref<4x18xf32, #tpu.memory_space<vmem>>) attributes {dimension_semantics = [#tpu.dimension_semantics<parallel>], iteration_bounds = array<i64: 2>, scalar_prefetch = 0 : i64, scratch_operands = 1 : i64, tpu.core_type = #tpu.core_type<tc>, window_params = [{transform_indices = @transform_0, window_bounds = array<i64: 1, 4, 16>}, {pipeline_mode = #tpu.pipeline_mode<synchronous>, transform_indices = @transform_1, window_bounds = array<i64: 16, 12>}, {transform_indices = @transform_2, window_bounds = array<i64: 1, 16, 16>}, {transform_indices = @transform_3, window_bounds = array<i64: 1, 16, 2>}]} {
    %cst = arith.constant 0.000000e+00 : f32
    %0 = vector.broadcast %cst : f32 to vector<4x1xf32>
    %c0 = arith.constant 0 : index
    %c0_0 = arith.constant 0 : index
    %1 = vector.load %arg5[%c0, %c0_0] : memref<4x18xf32, #tpu.memory_space<vmem>>, vector<4x1xf32>
    tpu.vector_store %arg5[%c0, %c0_0], %0 {strides = array<i32>} : memref<4x18xf32, #tpu.memory_space<vmem>>, vector<4x1xf32>,
    %cst_1 = arith.constant 0.000000e+00 : f32
    %2 = vector.broadcast %cst_1 : f32 to vector<4x1xf32>
    %c0_2 = arith.constant 0 : index
    %c17 = arith.constant 17 : index
    %3 = vector.load %arg5[%c0_2, %c17] : memref<4x18xf32, #tpu.memory_space<vmem>>, vector<4x1xf32>
    tpu.vector_store %arg5[%c0_2, %c17], %2 {strides = array<i32>} : memref<4x18xf32, #tpu.memory_space<vmem>>, vector<4x1xf32>,
    %c0_3 = arith.constant 0 : index
    %c0_4 = arith.constant 0 : index
    %c0_5 = arith.constant 0 : index
    %4 = vector.load %arg1[%c0_3, %c0_4, %c0_5] : memref<1x4x16xf32, #tpu.memory_space<vmem>>, vector<1x4x16xf32>
    %5 = vector.shape_cast %4 : vector<1x4x16xf32> to vector<4x16xf32>
    %c0_6 = arith.constant 0 : index
    %c1 = arith.constant 1 : index
    %6 = vector.load %arg5[%c0_6, %c1] : memref<4x18xf32, #tpu.memory_space<vmem>>, vector<4x16xf32>
    tpu.vector_store %arg5[%c0_6, %c1], %5 {strides = array<i32>} : memref<4x18xf32, #tpu.memory_space<vmem>>, vector<4x16xf32>,
    %c0_7 = arith.constant 0 : index
    %c0_8 = arith.constant 0 : index
    %7 = vector.load %arg5[%c0_7, %c0_8] : memref<4x18xf32, #tpu.memory_space<vmem>>, vector<4x16xf32>
    %c0_9 = arith.constant 0 : index
    %c1_10 = arith.constant 1 : index
    %8 = vector.load %arg5[%c0_9, %c1_10] : memref<4x18xf32, #tpu.memory_space<vmem>>, vector<4x16xf32>
    %c0_11 = arith.constant 0 : index
    %c2 = arith.constant 2 : index
    %9 = vector.load %arg5[%c0_11, %c2] : memref<4x18xf32, #tpu.memory_space<vmem>>, vector<4x16xf32>
    %10 = tpu.concatenate %7, %8, %9 in 0 : vector<4x16xf32>, vector<4x16xf32>, vector<4x16xf32> -> vector<12x16xf32>
    %c0_12 = arith.constant 0 : index
    %c0_13 = arith.constant 0 : index
    %11 = vector.load %arg2[%c0_12, %c0_13] : memref<16x12xf32, #tpu.memory_space<vmem>>, vector<16x12xf32>
    %cst_14 = arith.constant dense<0.000000e+00> : vector<16x16xf32>
    %12 = tpu.matmul %11, %10, %cst_14 {dimension_numbers = #tpu.dot_dimension_numbers<[1], [0], [0], [1], [0, 0, 1, 1], [], []>} : vector<16x12xf32>, vector<12x16xf32>, vector<16x16xf32> -> vector<16x16xf32>
    %c0_15 = arith.constant 0 : index
    %c0_16 = arith.constant 0 : index
    %c0_17 = arith.constant 0 : index
    %13 = vector.load %arg3[%c0_15, %c0_16, %c0_17] : memref<1x16x16xf32, #tpu.memory_space<vmem>>, vector<1x16x16xf32>
    %14 = vector.shape_cast %13 : vector<1x16x16xf32> to vector<16x16xf32>
    %15 = vector.shape_cast %12 : vector<16x16xf32> to vector<1x16x16xf32>
    tpu.vector_store %arg3[%c0_15, %c0_16, %c0_17], %15 {strides = array<i32>} : memref<1x16x16xf32, #tpu.memory_space<vmem>>, vector<1x16x16xf32>,
    %cst_18 = arith.constant dense<0.000000e+00> : vector<16xf32>
    %16 = vector.multi_reduction <add>, %12, %cst_18 [1] : vector<16x16xf32> to vector<16xf32>
    %17 = vector.shape_cast %16 : vector<16xf32> to vector<16x1xf32>
    %c0_19 = arith.constant 0 : index
    %c0_20 = arith.constant 0 : index
    %c0_21 = arith.constant 0 : index
    %18 = vector.load %arg4[%c0_19, %c0_20, %c0_21] : memref<1x16x2xf32, #tpu.memory_space<vmem>>, vector<1x16x1xf32>
    %19 = vector.shape_cast %18 : vector<1x16x1xf32> to vector<16x1xf32>
    %20 = vector.shape_cast %17 : vector<16x1xf32> to vector<1x16x1xf32>
    tpu.vector_store %arg4[%c0_19, %c0_20, %c0_21], %20 {strides = array<i32>} : memref<1x16x2xf32, #tpu.memory_space<vmem>>, vector<1x16x1xf32>,
    %21 = arith.mulf %12, %12 : vector<16x16xf32>
    %cst_22 = arith.constant dense<0.000000e+00> : vector<16xf32>
    %22 = vector.multi_reduction <add>, %21, %cst_22 [1] : vector<16x16xf32> to vector<16xf32>
    %23 = vector.shape_cast %22 : vector<16xf32> to vector<16x1xf32>
    %c0_23 = arith.constant 0 : index
    %c0_24 = arith.constant 0 : index
    %c1_25 = arith.constant 1 : index
    %24 = vector.load %arg4[%c0_23, %c0_24, %c1_25] : memref<1x16x2xf32, #tpu.memory_space<vmem>>, vector<1x16x1xf32>
    %25 = vector.shape_cast %24 : vector<1x16x1xf32> to vector<16x1xf32>
    %26 = vector.shape_cast %23 : vector<16x1xf32> to vector<1x16x1xf32>
    tpu.vector_store %arg4[%c0_23, %c0_24, %c1_25], %26 {strides = array<i32>} : memref<1x16x2xf32, #tpu.memory_space<vmem>>, vector<1x16x1xf32>,
    return
  }
  func.func @transform_0(%arg0: i32) -> (i32, i32, i32) {
    %c0_i32 = arith.constant 0 : i32
    %c0_i32_0 = arith.constant 0 : i32
    %c0_i32_1 = arith.constant 0 : i32
    return %arg0, %c0_i32, %c0_i32_0 : i32, i32, i32
  }
  func.func @transform_1(%arg0: i32) -> (i32, i32) {
    %c0_i32 = arith.constant 0 : i32
    %c0_i32_0 = arith.constant 0 : i32
    %c0_i32_1 = arith.constant 0 : i32
    return %c0_i32, %c0_i32_0 : i32, i32
  }
  func.func @transform_2(%arg0: i32) -> (i32, i32, i32) {
    %c0_i32 = arith.constant 0 : i32
    %c0_i32_0 = arith.constant 0 : i32
    %c0_i32_1 = arith.constant 0 : i32
    return %arg0, %c0_i32, %c0_i32_0 : i32, i32, i32
  }
  func.func @transform_3(%arg0: i32) -> (i32, i32, i32) {
    %c0_i32 = arith.constant 0 : i32
    %c0_i32_0 = arith.constant 0 : i32
    %c0_i32_1 = arith.constant 0 : i32
    return %arg0, %c0_i32, %c0_i32_0 : i32, i32, i32
  }
}

</mosaic_0001>

<llo_original>
// kernel: tpu_custom_call.1
$region0: #{tpu_custom_call.1}
  #allocation0 [shape = 'u32[]', space=smem, size = 0x4, offset = 0x4, fixed_abs, tag = 'smem constant byte address 0x4 - core index']
  #allocation1 [shape = 'u32[72,128]{1,0:T(1,128)}', space=vmem, size = 0x9000, scoped, tag = 'internal scratch']
  #allocation2 [shape = 'f32[4,18]{1,0:T(4,128)}', space=vmem, size = 0x800, scoped, tag = 'scratch operand']
  %s0 = inlined_call_operand.hbm [shape: f32[2,4,16], index: 0, kind: input, shape index: {}]
  %s1 = inlined_call_operand.hbm [shape: f32[16,12], index: 1, kind: input, shape index: {}]
  %s2 = inlined_call_operand.hbm [shape: f32[2,16,16], index: 2, kind: output, shape index: {0}]
  %s3 = inlined_call_operand.vmem [shape: f32[2,16,2], index: 3, kind: output, shape index: {1}]
  %4 = xla_tuple %s2, %s3
  %s5 = sld [smem:[#allocation0]]
  $region57: #{tpu_custom_call.1} parent=0
    _
  %s7 = ssub.s32 1, %s5
  %s8 = scalar_select 0, %s7, %s5
  $region1: #{tpu_custom_call.1} parent=0
    #allocation3 [shape = 'u8[4096]{0}', space=vmem, size = 0x1000, scoped, tag = 'input window, operand 0']
    #allocation4 [shape = 's32[2]{0}', space=sflag, size = 0x8, scoped, tag = 'scoped memory for tpu_custom_call.1']
    #allocation5 [shape = 's32[2]{0}', space=sflag, size = 0x8, scoped, tag = 'scoped memory for tpu_custom_call.1']
    #allocation6 [shape = 'u8[8192]{0}', space=vmem, size = 0x2000, scoped, tag = 'input window, operand 1, single buffered']
    #allocation7 [shape = 's32[1]{0}', space=sflag, size = 0x4, scoped, tag = 'scoped memory for tpu_custom_call.1']
    #allocation8 [shape = 'u8[16384]{0}', space=vmem, size = 0x4000, scoped, tag = 'output window, operand 0']
    %9 = vsyncpa [#allocation4], 0
    %s10 = scalar_lea.sflag [#allocation4], 1
    %11 = vsyncpa %s10, 0
    %12 = vsyncpa [#allocation7], 0
    %13 = vsyncpa [#allocation5], 0
    %s14 = scalar_lea.sflag [#allocation5], 1
    %15 = vsyncpa %s14, 0
    loop: start=0, step=1, limit=4
    $region2: #{tpu_custom_call.1} parent=1 // loop_pre_header
      _
    $region3: #{tpu_custom_call.1} parent=1 // loop_header
      %s17 = sphi 0, %s21
      %p18 = scmp.ge.s32.totalorder %s17, 4
      %s27 = sphi 0, %s29
      %s30 = sphi 0, %s27
      %s31 = sphi 0, %s30
      %s47 = sphi 0, %s31
      %s51 = sphi 0, %s51
      %s53 = sphi 0, %s51
      %s54 = sphi 0, %s53
      %s68 = sphi 0, %s54
      %s74 = sphi 0, %s76
      %s77 = sphi 0, %s74
      %s78 = sphi 0, %s77
      %s94 = sphi 0, %s78
      %s100 = sphi 0, %s102
      %s103 = sphi 0, %s100
      %s104 = sphi 0, %s103
      %s120 = sphi 0, %s104
    $region4: #{tpu_custom_call.1} parent=1 // loop_header_branch
      %20 = sbr.rel (%p18) target = $region8
    $region5: #{tpu_custom_call.1} parent=1 // loop_body
      %s22 = ssub.s32 %s17, 1
      %s23 = ssub.s32 %s17, 2
      %s24 = sadd.s32 %s17, 1
      %s25 = ssub.s32 %s17, %s24
      %p26 = scmp.eq.s32.totalorder %s25, 0
      %s28 = sadd.s32 %s27, 1
      %s29 = scalar_select %p26, %s27, %s28
      %p32 = pneg %p26
      %p33 = scmp.eq.s32.totalorder %s17, 1
      %p34 = por %p32, %p33
      %p35 = scmp.ne.s32.totalorder %s27, %s30
      %p36 = scmp.eq.s32.totalorder %s17, 0
      %p37 = por %p35, %p36
      %p38 = scmp.ne.s32.totalorder %s27, %s30
      %p39 = scmp.eq.s32.totalorder %s22, 1
      %p40 = por %p38, %p39
      %p41 = scmp.ne.s32.totalorder %s30, %s31
      %p42 = scmp.eq.s32.totalorder %s22, 0
      %p43 = por %p41, %p42
      %p44 = scmp.ne.s32.totalorder %s30, %s31
      %p45 = scmp.eq.s32.totalorder %s23, 1
      %p46 = por %p44, %p45
      %p48 = scmp.ne.s32.totalorder %s31, %s47
      %p49 = scmp.eq.s32.totalorder %s23, 0
      %p50 = por %p48, %p49
      %s52 = sadd.s32 %s51, 1
      %p55 = scmp.eq.s32.totalorder %s17, 1
      %p56 = scmp.ne.s32.totalorder %s51, %s53
      %p57 = scmp.eq.s32.totalorder %s17, 0
      %p58 = por %p56, %p57
      %p59 = scmp.ne.s32.totalorder %s51, %s53
      %p60 = scmp.eq.s32.totalorder %s22, 1
      %p61 = por %p59, %p60
      %p62 = scmp.ne.s32.totalorder %s53, %s54
      %p63 = scmp.eq.s32.totalorder %s22, 0
      %p64 = por %p62, %p63
      %p65 = scmp.ne.s32.totalorder %s53, %s54
      %p66 = scmp.eq.s32.totalorder %s23, 1
      %p67 = por %p65, %p66
      %p69 = scmp.ne.s32.totalorder %s54, %s68
      %p70 = scmp.eq.s32.totalorder %s23, 0
      %p71 = por %p69, %p70
      %s72 = ssub.s32 %s17, %s24
      %p73 = scmp.eq.s32.totalorder %s72, 0
      %s75 = sadd.s32 %s74, 1
      %s76 = scalar_select %p73, %s74, %s75
      %p79 = pneg %p73
      %p80 = scmp.eq.s32.totalorder %s17, 1
      %p81 = por %p79, %p80
      %p82 = scmp.ne.s32.totalorder %s74, %s77
      %p83 = scmp.eq.s32.totalorder %s17, 0
      %p84 = por %p82, %p83
      %p85 = scmp.ne.s32.totalorder %s74, %s77
      %p86 = scmp.eq.s32.totalorder %s22, 1
      %p87 = por %p85, %p86
      %p88 = scmp.ne.s32.totalorder %s77, %s78
      %p89 = scmp.eq.s32.totalorder %s22, 0
      %p90 = por %p88, %p89
      %p91 = scmp.ne.s32.totalorder %s77, %s78
      %p92 = scmp.eq.s32.totalorder %s23, 1
      %p93 = por %p91, %p92
      %p95 = scmp.ne.s32.totalorder %s78, %s94
      %p96 = scmp.eq.s32.totalorder %s23, 0
      %p97 = por %p95, %p96
      %s98 = ssub.s32 %s17, %s24
      %p99 = scmp.eq.s32.totalorder %s98, 0
      %s101 = sadd.s32 %s100, 1
      %s102 = scalar_select %p99, %s100, %s101
      %p105 = pneg %p99
      %p106 = scmp.eq.s32.totalorder %s17, 1
      %p107 = por %p105, %p106
      %p108 = scmp.ne.s32.totalorder %s100, %s103
      %p109 = scmp.eq.s32.totalorder %s17, 0
      %p110 = por %p108, %p109
      %p111 = scmp.ne.s32.totalorder %s100, %s103
      %p112 = scmp.eq.s32.totalorder %s22, 1
      %p113 = por %p111, %p112
      %p114 = scmp.ne.s32.totalorder %s103, %s104
      %p115 = scmp.eq.s32.totalorder %s22, 0
      %p116 = por %p114, %p115
      %p117 = scmp.ne.s32.totalorder %s103, %s104
      %p118 = scmp.eq.s32.totalorder %s23, 1
      %p119 = por %p117, %p118
      %p121 = scmp.ne.s32.totalorder %s104, %s120
      %p122 = scmp.eq.s32.totalorder %s23, 0
      %p123 = por %p121, %p122
      %p124 = scmp.le.s32.totalorder 1, %s17
      %p125 = scmp.lt.s32.totalorder %s17, 3
      %p126 = pnand %p124, %p125
      %p127 = pneg %p126
      // Predicated region
      $region9: #{tpu_custom_call.1} parent=5 // pred_check
        _
      $region10: #{tpu_custom_call.1} parent=5 // pred_check_branch
        %129 = sbr.rel (%p126) target = $region12
      $region11: #{tpu_custom_call.1} parent=5 // pred_region
        %s130 = ssub.s32 %s17, 1
        // Predicated region
        $region13: #{tpu_custom_call.1} parent=11 // pred_check
          %p131 = pneg %p64
        $region14: #{tpu_custom_call.1} parent=11 // pred_check_branch
          %133 = sbr.rel (%p131) target = $region16
        $region15: #{tpu_custom_call.1} parent=11 // pred_region
          %135 = vsyncadd [#allocation7], 0
          %s136 = sshll.u32 %s1, 4
          %s137 = int_to_ptr.hbm [resolvable:$true] %s136
          %s138 = sshll.u32 [#allocation6], 4
          %s139 = int_to_ptr.vmem [resolvable:$true] %s138
          %144 = dma.hbm_to_vmem [thread:$0]  %s137, 256, %s139, [#allocation7], 128, 128, 8
        $region16: #{tpu_custom_call.1} parent=11 // pred_fallthru
          _
      $region12: #{tpu_custom_call.1} parent=5 // pred_fallthru
        _
      %p145 = scmp.lt.s32.totalorder %s17, 2
      // Predicated region
      $region17: #{tpu_custom_call.1} parent=5 // pred_check
        %p146 = pneg %p145
      $region18: #{tpu_custom_call.1} parent=5 // pred_check_branch
        %148 = sbr.rel (%p146) target = $region20
      $region19: #{tpu_custom_call.1} parent=5 // pred_region
        // Predicated region
        $region21: #{tpu_custom_call.1} parent=19 // pred_check
          %p149 = pneg %p37
        $region22: #{tpu_custom_call.1} parent=19 // pred_check_branch
          %151 = sbr.rel (%p149) target = $region24
        $region23: #{tpu_custom_call.1} parent=19 // pred_region
          %s152 = sand.u32 %s27, 1
          %s153 = scalar_lea.sflag [#allocation4], %s152
          %s154 = sand.u32 %s27, 1
          %s155 = smul.addr %s154, 4
          %s156 = scalar_lea.vmem [#allocation3], %s155
          %158 = vsyncadd %s153, 0
          %s159 = smul.addr %s17, 4
          %s160 = scalar_lea.hbm %s0, %s159
          %s162 = sshll.u32 %s160, 4
          %s163 = int_to_ptr.hbm [resolvable:$true] %s162
          %s164 = sshll.u32 %s156, 4
          %s165 = int_to_ptr.vmem [resolvable:$true] %s164
          %167 = dma.hbm_to_vmem [thread:$0]  %s163, 64, %s165, %s153
        $region24: #{tpu_custom_call.1} parent=19 // pred_fallthru
          _
      $region20: #{tpu_custom_call.1} parent=5 // pred_fallthru
        _
      %p168 = scmp.le.s32.totalorder 1, %s17
      %p169 = scmp.lt.s32.totalorder %s17, 3
      %p170 = pnand %p168, %p169
      %p171 = pneg %p170
      // Predicated region
      $region25: #{tpu_custom_call.1} parent=5 // pred_check
        _
      $region26: #{tpu_custom_call.1} parent=5 // pred_check_branch
        %173 = sbr.rel (%p170) target = $region28
      $region27: #{tpu_custom_call.1} parent=5 // pred_region
        %s174 = ssub.s32 %s17, 1
        %s175 = sand.u32 %s30, 1
        %s176 = scalar_lea.sflag [#allocation4], %s175
        %s177 = sand.u32 %s30, 1
        %s178 = smul.addr %s177, 4
        %s179 = scalar_lea.vmem [#allocation3], %s178
        // Predicated region
        $region29: #{tpu_custom_call.1} parent=27 // pred_check
          %p180 = pneg %p43
        $region30: #{tpu_custom_call.1} parent=27 // pred_check_branch
          %182 = sbr.rel (%p180) target = $region32
        $region31: #{tpu_custom_call.1} parent=27 // pred_region
          %184 = dma.done %s176, 64
        $region32: #{tpu_custom_call.1} parent=27 // pred_fallthru
          _
        // Predicated region
        $region33: #{tpu_custom_call.1} parent=27 // pred_check
          %p185 = pneg %p64
        $region34: #{tpu_custom_call.1} parent=27 // pred_check_branch
          %187 = sbr.rel (%p185) target = $region36
        $region35: #{tpu_custom_call.1} parent=27 // pred_region
          %189 = dma.done [#allocation7], 256
        $region36: #{tpu_custom_call.1} parent=27 // pred_fallthru
          _
        %s190 = sand.u32 %s30, 1
        %s191 = scalar_lea.sflag [#allocation4], %s190
        %s192 = sand.u32 %s30, 1
        %s193 = smul.addr %s192, 4
        %s194 = scalar_lea.vmem [#allocation3], %s193
        %p195 = pneg %p43
        %p196 = pneg %p40
        %p197 = pneg %p64
        %p198 = pneg %p61
        %p199 = pneg %p90
        %p200 = pneg %p87
        %s201 = sand.u32 %s77, 1
        %s202 = scalar_lea.sflag [#allocation5], %s201
        %s203 = sand.u32 %s77, 1
        %s204 = smul.addr %s203, 16
        %s205 = scalar_lea.vmem [#allocation8], %s204
        %p206 = pneg %p116
        %p207 = pneg %p113
        %p208 = scmp.lt.s32.totalorder %s22, 1
        %s209 = scalar_select %p208, %s22, 1
        %s210 = smul.addr %s209, 2
        %s211 = smul.addr %s210, 8
        %s212 = scalar_lea.vmem %s3, %s211
        %p213 = scmp.lt.s32.totalorder %s22, 1
        %s214 = scalar_select %p213, %s22, 1
        %s215 = smul.addr %s214, 2
        %s216 = smul.addr %s215, 8
        %s217 = scalar_lea.vmem %s3, %s216
        %vm218 = vcmask 3072
        %219 = vst.msk [vmem:[#allocation2] sm:$0xf] %vm218, 0.0
        %vm220 = vcmask 142472
        %221 = vst.msk [vmem:[#allocation2] sm:$0xf] %vm220, 0.0
        %v222 = vld [vmem:[%s179] sm:$0xf]
        %224 = vrot.lane.b32.xlu0 %v222, 1
        %v225 = vpop.permute.xlu0 %224
        %vm227 = vcmask 134152
        %228 = vst.msk [vmem:[#allocation2] sm:$0xf] %vm227, %v225
        %v229 = vld [vmem:[#allocation2] sm:$0xf]
        %v231 = vrot.slane %v229, 4
        %232 = vrot.lane.b32.xlu0 %v231, 127
        %v233 = vpop.permute.xlu0 %232
        %235 = vrot.lane.b32.xlu0 %v229, 126
        %v236 = vpop.permute.xlu0 %235
        %vm237 = vcmask 1043456
        %v238 = vsel %vm237, %v229, %v233
        %v239 = vld [vmem:[#allocation6] sm:$0xff]
        %v240 = vld [vmem:[#allocation6 + $0x8] sm:$0xff]
        %vm241 = vcmask 97280
        %v243 = vsel %vm241, %v239, 0
        %v246 = vsel %vm241, %v240, 0
        %v248 = vsel %vm237, %v236, 0
        %250 = vmatpush.msra.mxu0 0.0
        %251 = vmatpush.msra.mxu0 0.0
        %252 = vmatpush.msra.mxu0 0.0
        %253 = vmatpush.msra.mxu0 0.0
        %254 = vmatpush.msra.mxu0 0.0
        %255 = vmatpush.msra.mxu0 0.0
        %256 = vmatpush.msra.mxu0 0.0
        %257 = vmatpush.msra.mxu0 0.0
        %258 = vmatpush.msra.mxu0 0.0
        %259 = vmatpush.msra.mxu0 0.0
        %260 = vmatpush.msra.mxu0 0.0
        %261 = vmatpush.msra.mxu0 0.0
        %262 = vmatpush.msra.mxu0 0.0
        %263 = vmatpush.msra.mxu0 0.0
        %264 = vmatpush.msra.mxu0 %v248
        %265 = vmatpush.msra.mxu0 %v238
        %266 = vmatmul.f32.gmra.mxu0 %v243
        %v267 = vpop.f32.mrf.mxu0
        %v268 = vadd.f32 0.0, %v267
        %269 = vmatmul.f32.gmra.mxu0 %v246
        %v270 = vpop.f32.mrf.mxu0
        %v271 = vadd.f32 0.0, %v270
        %272 = vdwg.mxu0
        %vm273 = vcmask 130048
        %274 = vst.msk [vmem:[%s205] sm:$0xff] %vm273, %v268
        %275 = vst.msk [vmem:[%s205 + $0x8] sm:$0xff] %vm273, %v271
        %v276 = vsel %vm273, %v268, 0.0
        %277 = vadd.xlane.f32.xlu0 %v276
        %v278 = vpop.xlane.xlu0 %277
        %v279 = vsel %vm273, %v271, 0.0
        %280 = vadd.xlane.f32.xlu0 %v279
        %v281 = vpop.xlane.xlu0 %280
        %vm282 = vcmask 7168
        %283 = vst.msk [vmem:[%s217] sm:$0xff] %vm282, %v278
        %284 = vst.msk [vmem:[%s217 + $0x8] sm:$0xff] %vm282, %v281
        %v285 = vmul.f32 %v268, %v268
        %v286 = vmul.f32 %v271, %v271
        %v287 = vsel %vm273, %v285, 0.0
        %288 = vadd.xlane.f32.xlu0 %v287
        %v289 = vpop.xlane.xlu0 %288
        %v290 = vsel %vm273, %v286, 0.0
        %291 = vadd.xlane.f32.xlu0 %v290
        %v292 = vpop.xlane.xlu0 %291
        %vm293 = vcmask 15368
        %294 = vst.msk [vmem:[%s217] sm:$0xff] %vm293, %v289
        %295 = vst.msk [vmem:[%s217 + $0x8] sm:$0xff] %vm293, %v292
        %s296 = sand.u32 %s77, 1
        %s297 = scalar_lea.sflag [#allocation5], %s296
        %s298 = sand.u32 %s77, 1
        %s299 = smul.addr %s298, 16
        %s300 = scalar_lea.vmem [#allocation8], %s299
        %p301 = scmp.lt.s32.totalorder %s22, 1
        %s302 = scalar_select %p301, %s22, 1
        %s303 = smul.addr %s302, 2
        %s304 = smul.addr %s303, 8
        %s305 = scalar_lea.vmem %s3, %s304
        // Predicated region
        $region37: #{tpu_custom_call.1} parent=27 // pred_check
          %p306 = pneg %p87
        $region38: #{tpu_custom_call.1} parent=27 // pred_check_branch
          %308 = sbr.rel (%p306) target = $region40
        $region39: #{tpu_custom_call.1} parent=27 // pred_region
          %310 = vsyncadd %s297, 0
          %s311 = smul.addr %s22, 2
          %s312 = smul.addr %s311, 8
          %s313 = scalar_lea.hbm %s2, %s312
          %s314 = sshll.u32 %s300, 4
          %s315 = int_to_ptr.vmem [resolvable:$true] %s314
          %s316 = sshll.u32 %s313, 4
          %s317 = int_to_ptr.hbm [resolvable:$true] %s316
          %322 = dma.vmem_to_hbm [thread:$0]  %s315, 256, %s317, %s297, 128, 128, 8
        $region40: #{tpu_custom_call.1} parent=27 // pred_fallthru
          _
        // Predicated region
        $region41: #{tpu_custom_call.1} parent=27 // pred_check
          %p323 = pneg %p113
        $region42: #{tpu_custom_call.1} parent=27 // pred_check_branch
          %325 = sbr.rel (%p323) target = $region44
        $region43: #{tpu_custom_call.1} parent=27 // pred_region
          _
        $region44: #{tpu_custom_call.1} parent=27 // pred_fallthru
          _
      $region28: #{tpu_custom_call.1} parent=5 // pred_fallthru
        _
      %p326 = scmp.le.s32.totalorder 2, %s17
      // Predicated region
      $region45: #{tpu_custom_call.1} parent=5 // pred_check
        %p327 = pneg %p326
      $region46: #{tpu_custom_call.1} parent=5 // pred_check_branch
        %329 = sbr.rel (%p327) target = $region48
      $region47: #{tpu_custom_call.1} parent=5 // pred_region
        %s330 = ssub.s32 %s17, 2
        // Predicated region
        $region49: #{tpu_custom_call.1} parent=47 // pred_check
          %p331 = pneg %p93
        $region50: #{tpu_custom_call.1} parent=47 // pred_check_branch
          %333 = sbr.rel (%p331) target = $region52
        $region51: #{tpu_custom_call.1} parent=47 // pred_region
          %s334 = sand.u32 %s78, 1
          %s335 = scalar_lea.sflag [#allocation5], %s334
          %s336 = sand.u32 %s78, 1
          %s337 = smul.addr %s336, 16
          %s338 = scalar_lea.vmem [#allocation8], %s337
          %340 = dma.done %s335, 256
        $region52: #{tpu_custom_call.1} parent=47 // pred_fallthru
          _
        // Predicated region
        $region53: #{tpu_custom_call.1} parent=47 // pred_check
          %p341 = pneg %p119
        $region54: #{tpu_custom_call.1} parent=47 // pred_check_branch
          %343 = sbr.rel (%p341) target = $region56
        $region55: #{tpu_custom_call.1} parent=47 // pred_region
          %p344 = scmp.lt.s32.totalorder %s23, 1
          %s345 = scalar_select %p344, %s23, 1
          %s346 = smul.addr %s345, 2
          %s347 = smul.addr %s346, 8
          %s348 = scalar_lea.vmem %s3, %s347
        $region56: #{tpu_custom_call.1} parent=47 // pred_fallthru
          _
      $region48: #{tpu_custom_call.1} parent=5 // pred_fallthru
        _
    $region6: #{tpu_custom_call.1} parent=1 // loop_footer
      %s21 = sadd.s32 1, %s17
    $region7: #{tpu_custom_call.1} parent=1 // loop_footer_branch
      %16 = sbr.rel target = $region3
    $region8: #{tpu_custom_call.1} parent=1 // loop_exit
      _
    %349 = vsyncpa [#allocation4], 1
    %s350 = scalar_lea.sflag [#allocation4], 1
    %351 = vsyncpa %s350, 1
    %352 = vsyncpa [#allocation7], 1
    %353 = vsyncpa [#allocation5], 1
    %s354 = scalar_lea.sflag [#allocation5], 1
    %355 = vsyncpa %s354, 1

</llo_original>
